<compile_context>
chip_gen: v6e
topology: v6e:2x2x1
jax: 0.10.0
libtpu: 0.0.40
codegen_flags: <defaults>
</compile_context>

<pallas_src>
import math

import jax
import jax.numpy as jnp
from jax.experimental import pallas as pl
from jax.experimental.pallas import tpu as pltpu

# kornia.color.rgb_to_xyz coefficients.
_M = (
    (0.412453, 0.357580, 0.180423),
    (0.212671, 0.715160, 0.072169),
    (0.019334, 0.119193, 0.950227),
)

_LANES = 128
_MIN_BLOCKS = 4                          # >=2 blocks per TC on v7x + pipelining
_TARGET_BLOCK_BYTES = 4 * 1024 * 1024    # ~4 MiB/block -> ~16 MiB double-buffered


def _apply_matrix(r, g, b):
    xx = _M[0][0] * r + _M[0][1] * g + _M[0][2] * b
    yy = _M[1][0] * r + _M[1][1] * g + _M[1][2] * b
    zz = _M[2][0] * r + _M[2][1] * g + _M[2][2] * b
    return xx, yy, zz


def _rgb2xyz_kernel_dense(x_ref, o_ref):
    # Block: (TB, 3, TS, 128).  Channel axis is dim 1, so each channel slice
    # is a dense (TB, TS, 128) slab of full (8,128) tiles -> unmasked ops.
    x = x_ref[...].astype(jnp.float32)
    xx, yy, zz = _apply_matrix(x[:, 0], x[:, 1], x[:, 2])
    o_ref[...] = jnp.stack([xx, yy, zz], axis=1).astype(o_ref.dtype)


def _rgb2xyz_kernel_sliver(x_ref, o_ref):
    # Fallback for H*W % 128 != 0.  Block: (1, 3, T); channel sits on the
    # sublane axis.  Fuse the three channel writes into one store.
    x = x_ref[...].astype(jnp.float32)
    xx, yy, zz = _apply_matrix(x[:, 0:1, :], x[:, 1:2, :], x[:, 2:3, :])
    o_ref[...] = jnp.concatenate([xx, yy, zz], axis=1).astype(o_ref.dtype)


def _pick_dense_tiling(batch: int, rows: int, itemsize: int):
    """Choose (TB images, TS rows) per block for the (B, 3, rows, 128) layout."""
    per_row_bytes = 3 * _LANES * itemsize
    per_image_bytes = rows * per_row_bytes

    if per_image_bytes >= _TARGET_BLOCK_BYTES:
        # Large image: one image per block, tile the row axis.
        tb = 1
        ts = max(8, (_TARGET_BLOCK_BYTES // per_row_bytes) // 8 * 8)
        ts = min(ts, rows)
    else:
        # Small image(s): pack several images into one block.
        tb = max(1, min(batch, _TARGET_BLOCK_BYTES // per_image_bytes))
        ts = rows

    def nblocks(tb_, ts_):
        return pl.cdiv(batch, tb_) * pl.cdiv(rows, ts_)

    # Ensure enough grid blocks for megacore sharding / DMA-compute overlap.
    while nblocks(tb, ts) < _MIN_BLOCKS:
        if tb > 1:
            tb = max(1, tb // 2)
        elif ts > 8:
            ts = max(8, (((ts + 1) // 2) + 7) // 8 * 8)  # keep multiple of 8
        else:
            break
    return tb, ts


def rgb_to_xyz(x: jax.Array) -> jax.Array:
    """Convert RGB (*, 3, H, W) to XYZ using a Pallas TPU kernel."""
    if x.ndim < 3 or x.shape[-3] != 3:
        raise ValueError(f"expected shape (*, 3, H, W), got {x.shape}")
    if x.size == 0:
        return x

    orig_shape = x.shape
    hw = x.shape[-2] * x.shape[-1]
    batch = math.prod(x.shape[:-3]) if x.ndim > 3 else 1
    itemsize = jnp.dtype(x.dtype).itemsize

    cost = pl.CostEstimate(
        flops=15 * batch * hw,               # 3 outputs x (3 mul + 2 add) / pixel
        bytes_accessed=2 * batch * 3 * hw * itemsize,
        transcendentals=0,
    )
    cparams = pltpu.CompilerParams(
        dimension_semantics=("parallel", "parallel"),
        vmem_limit_bytes=32 * 1024 * 1024,
    )

    if hw % _LANES == 0:
        # Main path: each channel becomes a dense (rows, 128) plane.
        rows = hw // _LANES
        tb, ts = _pick_dense_tiling(batch, rows, itemsize)
        x4 = x.reshape(batch, 3, rows, _LANES)   # free row-major reshape
        out = pl.pallas_call(
            _rgb2xyz_kernel_dense,
            out_shape=jax.ShapeDtypeStruct((batch, 3, rows, _LANES), x.dtype),
            grid_spec=pltpu.PrefetchScalarGridSpec(
                num_scalar_prefetch=0,
                grid=(pl.cdiv(batch, tb), pl.cdiv(rows, ts)),
                in_specs=[pl.BlockSpec((tb, 3, ts, _LANES),
                                       lambda i, j: (i, 0, j, 0))],
                out_specs=pl.BlockSpec((tb, 3, ts, _LANES),
                                       lambda i, j: (i, 0, j, 0)),
            ),
            compiler_params=cparams,
            cost_estimate=cost,
        )(x4)
        return out.reshape(orig_shape)

    # Fallback: H*W not a multiple of 128 (rare). Channel on the sublane axis,
    # fused single store per block.
    x3 = x.reshape(batch, 3, hw)
    target_cols = _TARGET_BLOCK_BYTES // (3 * itemsize)
    tc = min(hw, max(_LANES, (target_cols // _LANES) * _LANES))
    out = pl.pallas_call(
        _rgb2xyz_kernel_sliver,
        out_shape=jax.ShapeDtypeStruct((batch, 3, hw), x.dtype),
        grid_spec=pltpu.PrefetchScalarGridSpec(
            num_scalar_prefetch=0,
            grid=(batch, pl.cdiv(hw, tc)),
            in_specs=[pl.BlockSpec((1, 3, tc), lambda b, j: (b, 0, j))],
            out_specs=pl.BlockSpec((1, 3, tc), lambda b, j: (b, 0, j)),
        ),
        compiler_params=cparams,
        cost_estimate=cost,
    )(x3)
    return out.reshape(orig_shape)


def _reference(x: jax.Array) -> jax.Array:
    r = x[..., 0, :, :]
    g = x[..., 1, :, :]
    b = x[..., 2, :, :]
    xx, yy, zz = _apply_matrix(r, g, b)
    return jnp.stack([xx, yy, zz], axis=-3)


if __name__ == "__main__":
    key = jax.random.PRNGKey(0)
    # (batch=2, channels=3 RGB, 16x16 spatial), NCHW like PyTorch.
    x = jax.random.uniform(key, (2, 3, 16, 16), dtype=jnp.float32)

    y = rgb_to_xyz(x)
    y = jax.block_until_ready(y)

    y_ref = _reference(x)
    assert y.shape == x.shape and y.dtype == x.dtype
    assert jnp.allclose(y, y_ref, atol=1e-5, rtol=1e-5)

    # Also exercise the ragged/fallback path (H*W not a multiple of 128).
    x2 = jax.random.uniform(jax.random.PRNGKey(1), (2, 3, 5, 7), dtype=jnp.float32)
    y2 = jax.block_until_ready(rgb_to_xyz(x2))
    assert jnp.allclose(y2, _reference(x2), atol=1e-5, rtol=1e-5)

    print("KERNEL_OK")
</pallas_src>

<mosaic_0001>
module attributes {stable_mosaic.version = 11 : i64} {
  func.func @_rgb2xyz_kernel_dense(%arg0: i32, %arg1: i32, %arg2: memref<1x3x2x128xf32, #tpu.memory_space<vmem>>, %arg3: memref<1x3x2x128xf32, #tpu.memory_space<vmem>>) attributes {dimension_semantics = [#tpu.dimension_semantics<parallel>, #tpu.dimension_semantics<parallel>], iteration_bounds = array<i64: 2, 1>, scalar_prefetch = 0 : i64, scratch_operands = 0 : i64, tpu.core_type = #tpu.core_type<tc>, window_params = [{transform_indices = @transform_0, window_bounds = array<i64: 1, 3, 2, 128>}, {transform_indices = @transform_1, window_bounds = array<i64: 1, 3, 2, 128>}]} {
    %c0 = arith.constant 0 : index
    %c0_0 = arith.constant 0 : index
    %c0_1 = arith.constant 0 : index
    %c0_2 = arith.constant 0 : index
    %0 = vector.load %arg2[%c0, %c0_0, %c0_1, %c0_2] : memref<1x3x2x128xf32, #tpu.memory_space<vmem>>, vector<1x3x2x128xf32>
    %1 = vector.extract_strided_slice %0 {offsets = [0, 0, 0, 0], sizes = [1, 1, 2, 128], strides = [1, 1, 1, 1]} : vector<1x3x2x128xf32> to vector<1x1x2x128xf32>
    %2 = vector.shape_cast %1 : vector<1x1x2x128xf32> to vector<1x2x128xf32>
    %3 = vector.extract_strided_slice %0 {offsets = [0, 1, 0, 0], sizes = [1, 1, 2, 128], strides = [1, 1, 1, 1]} : vector<1x3x2x128xf32> to vector<1x1x2x128xf32>
    %4 = vector.shape_cast %3 : vector<1x1x2x128xf32> to vector<1x2x128xf32>
    %5 = vector.extract_strided_slice %0 {offsets = [0, 2, 0, 0], sizes = [1, 1, 2, 128], strides = [1, 1, 1, 1]} : vector<1x3x2x128xf32> to vector<1x1x2x128xf32>
    %6 = vector.shape_cast %5 : vector<1x1x2x128xf32> to vector<1x2x128xf32>
    %cst = arith.constant 4.124530e-01 : f32
    %7 = vector.broadcast %cst : f32 to vector<1x2x128xf32>
    %8 = arith.mulf %7, %2 : vector<1x2x128xf32>
    %cst_3 = arith.constant 3.575800e-01 : f32
    %9 = vector.broadcast %cst_3 : f32 to vector<1x2x128xf32>
    %10 = arith.mulf %9, %4 : vector<1x2x128xf32>
    %11 = arith.addf %8, %10 : vector<1x2x128xf32>
    %cst_4 = arith.constant 1.804230e-01 : f32
    %12 = vector.broadcast %cst_4 : f32 to vector<1x2x128xf32>
    %13 = arith.mulf %12, %6 : vector<1x2x128xf32>
    %14 = arith.addf %11, %13 : vector<1x2x128xf32>
    %cst_5 = arith.constant 2.126710e-01 : f32
    %15 = vector.broadcast %cst_5 : f32 to vector<1x2x128xf32>
    %16 = arith.mulf %15, %2 : vector<1x2x128xf32>
    %cst_6 = arith.constant 7.151600e-01 : f32
    %17 = vector.broadcast %cst_6 : f32 to vector<1x2x128xf32>
    %18 = arith.mulf %17, %4 : vector<1x2x128xf32>
    %19 = arith.addf %16, %18 : vector<1x2x128xf32>
    %cst_7 = arith.constant 7.216900e-02 : f32
    %20 = vector.broadcast %cst_7 : f32 to vector<1x2x128xf32>
    %21 = arith.mulf %20, %6 : vector<1x2x128xf32>
    %22 = arith.addf %19, %21 : vector<1x2x128xf32>
    %cst_8 = arith.constant 1.933400e-02 : f32
    %23 = vector.broadcast %cst_8 : f32 to vector<1x2x128xf32>
    %24 = arith.mulf %23, %2 : vector<1x2x128xf32>
    %cst_9 = arith.constant 1.191930e-01 : f32
    %25 = vector.broadcast %cst_9 : f32 to vector<1x2x128xf32>
    %26 = arith.mulf %25, %4 : vector<1x2x128xf32>
    %27 = arith.addf %24, %26 : vector<1x2x128xf32>
    %cst_10 = arith.constant 9.502270e-01 : f32
    %28 = vector.broadcast %cst_10 : f32 to vector<1x2x128xf32>
    %29 = arith.mulf %28, %6 : vector<1x2x128xf32>
    %30 = arith.addf %27, %29 : vector<1x2x128xf32>
    %31 = vector.shape_cast %14 : vector<1x2x128xf32> to vector<1x1x2x128xf32>
    %32 = vector.shape_cast %22 : vector<1x2x128xf32> to vector<1x1x2x128xf32>
    %33 = vector.shape_cast %30 : vector<1x2x128xf32> to vector<1x1x2x128xf32>
    %34 = tpu.concatenate %31, %32, %33 in 1 : vector<1x1x2x128xf32>, vector<1x1x2x128xf32>, vector<1x1x2x128xf32> -> vector<1x3x2x128xf32>
    %c0_11 = arith.constant 0 : index
    %c0_12 = arith.constant 0 : index
    %c0_13 = arith.constant 0 : index
    %c0_14 = arith.constant 0 : index
    %35 = vector.load %arg3[%c0_11, %c0_12, %c0_13, %c0_14] : memref<1x3x2x128xf32, #tpu.memory_space<vmem>>, vector<1x3x2x128xf32>
    tpu.vector_store %arg3[%c0_11, %c0_12, %c0_13, %c0_14], %34 {strides = array<i32>} : memref<1x3x2x128xf32, #tpu.memory_space<vmem>>, vector<1x3x2x128xf32>,
    return
  }
  func.func @transform_0(%arg0: i32, %arg1: i32) -> (i32, i32, i32, i32) {
    %c0_i32 = arith.constant 0 : i32
    %c0_i32_0 = arith.constant 0 : i32
    %c0_i32_1 = arith.constant 0 : i32
    return %arg0, %c0_i32, %arg1, %c0_i32_0 : i32, i32, i32, i32
  }
  func.func @transform_1(%arg0: i32, %arg1: i32) -> (i32, i32, i32, i32) {
    %c0_i32 = arith.constant 0 : i32
    %c0_i32_0 = arith.constant 0 : i32
    %c0_i32_1 = arith.constant 0 : i32
    return %arg0, %c0_i32, %arg1, %c0_i32_0 : i32, i32, i32, i32
  }
}

</mosaic_0001>

<llo_original>
// kernel: tpu_custom_call.1
$region0: #{tpu_custom_call.1}
  #allocation0 [shape = 'u32[]', space=smem, size = 0x4, offset = 0x4, fixed_abs, tag = 'smem constant byte address 0x4 - core index']
  #allocation1 [shape = 'u32[144,128]{1,0:T(1,128)}', space=vmem, size = 0x12000, scoped, tag = 'internal scratch']
  %s0 = inlined_call_operand.hbm [shape: f32[2,3,2,128], index: 0, kind: input, shape index: {}]
  %s1 = inlined_call_operand.hbm [shape: f32[2,3,2,128], index: 1, kind: output, shape index: {}]
  %s2 = sld [smem:[#allocation0]]
  $region41: #{tpu_custom_call.1} parent=0
    _
  %s4 = ssub.s32 1, %s2
  %s5 = scalar_select 0, %s4, %s2
  $region1: #{tpu_custom_call.1} parent=0
    #allocation2 [shape = 'u8[6144]{0}', space=vmem, size = 0x1800, scoped, tag = 'input window, operand 0']
    #allocation3 [shape = 's32[2]{0}', space=sflag, size = 0x8, scoped, tag = 'scoped memory for tpu_custom_call.1']
    #allocation4 [shape = 's32[2]{0}', space=sflag, size = 0x8, scoped, tag = 'scoped memory for tpu_custom_call.1']
    #allocation5 [shape = 'u8[6144]{0}', space=vmem, size = 0x1800, scoped, tag = 'output window, operand 0']
    %6 = vsyncpa [#allocation3], 0
    %s7 = scalar_lea.sflag [#allocation3], 1
    %8 = vsyncpa %s7, 0
    %9 = vsyncpa [#allocation4], 0
    %s10 = scalar_lea.sflag [#allocation4], 1
    %11 = vsyncpa %s10, 0
    loop: start=0, step=1, limit=4
    $region2: #{tpu_custom_call.1} parent=1 // loop_pre_header
      _
    $region3: #{tpu_custom_call.1} parent=1 // loop_header
      %s13 = sphi 0, %s17
      %p14 = scmp.ge.s32.totalorder %s13, 4
      %s20 = sphi 0, %s32
      %s21 = sphi 0, %s28
      %s22 = sphi 0, %s20
      %s23 = sphi 0, %s21
      %s24 = sphi 0, %s22
      %s25 = sphi 0, %s23
      %s37 = sphi 0, %s39
      %s40 = sphi 0, %s37
      %s41 = sphi 0, %s40
      %s57 = sphi 0, %s41
      %s65 = sphi 0, %s67
      %s68 = sphi 0, %s65
      %s69 = sphi 0, %s68
      %s85 = sphi 0, %s69
    $region4: #{tpu_custom_call.1} parent=1 // loop_header_branch
      %16 = sbr.rel (%p14) target = $region8
    $region5: #{tpu_custom_call.1} parent=1 // loop_body
      %s18 = ssub.s32 %s13, 1
      %s19 = ssub.s32 %s13, 2
      %s26 = sadd.s32 1, %s21
      %p27 = scmp.ge.s32.totalorder %s26, 1
      %s28 = scalar_select %p27, 0, %s26
      %s29 = sadd.s32 1, %s20
      %s30 = scalar_select %p27, %s29, %s20
      %p31 = scmp.ge.s32.totalorder %s30, 2
      %s32 = scalar_select %p31, 0, %s30
      %s33 = ssub.s32 %s20, %s32
      %s34 = ssub.s32 %s21, %s28
      %s35 = sor.u32 %s33, %s34
      %p36 = scmp.eq.s32.totalorder %s35, 0
      %s38 = sadd.s32 %s37, 1
      %s39 = scalar_select %p36, %s37, %s38
      %p42 = pneg %p36
      %p43 = scmp.eq.s32.totalorder %s13, 1
      %p44 = por %p42, %p43
      %p45 = scmp.ne.s32.totalorder %s37, %s40
      %p46 = scmp.eq.s32.totalorder %s13, 0
      %p47 = por %p45, %p46
      %p48 = scmp.ne.s32.totalorder %s37, %s40
      %p49 = scmp.eq.s32.totalorder %s18, 1
      %p50 = por %p48, %p49
      %p51 = scmp.ne.s32.totalorder %s40, %s41
      %p52 = scmp.eq.s32.totalorder %s18, 0
      %p53 = por %p51, %p52
      %p54 = scmp.ne.s32.totalorder %s40, %s41
      %p55 = scmp.eq.s32.totalorder %s19, 1
      %p56 = por %p54, %p55
      %p58 = scmp.ne.s32.totalorder %s41, %s57
      %p59 = scmp.eq.s32.totalorder %s19, 0
      %p60 = por %p58, %p59
      %s61 = ssub.s32 %s20, %s32
      %s62 = ssub.s32 %s21, %s28
      %s63 = sor.u32 %s61, %s62
      %p64 = scmp.eq.s32.totalorder %s63, 0
      %s66 = sadd.s32 %s65, 1
      %s67 = scalar_select %p64, %s65, %s66
      %p70 = pneg %p64
      %p71 = scmp.eq.s32.totalorder %s13, 1
      %p72 = por %p70, %p71
      %p73 = scmp.ne.s32.totalorder %s65, %s68
      %p74 = scmp.eq.s32.totalorder %s13, 0
      %p75 = por %p73, %p74
      %p76 = scmp.ne.s32.totalorder %s65, %s68
      %p77 = scmp.eq.s32.totalorder %s18, 1
      %p78 = por %p76, %p77
      %p79 = scmp.ne.s32.totalorder %s68, %s69
      %p80 = scmp.eq.s32.totalorder %s18, 0
      %p81 = por %p79, %p80
      %p82 = scmp.ne.s32.totalorder %s68, %s69
      %p83 = scmp.eq.s32.totalorder %s19, 1
      %p84 = por %p82, %p83
      %p86 = scmp.ne.s32.totalorder %s69, %s85
      %p87 = scmp.eq.s32.totalorder %s19, 0
      %p88 = por %p86, %p87
      %p89 = scmp.le.s32.totalorder 1, %s13
      %p90 = scmp.lt.s32.totalorder %s13, 3
      %p91 = pnand %p89, %p90
      %p92 = pneg %p91
      // Predicated region
      $region9: #{tpu_custom_call.1} parent=5 // pred_check
        _
      $region10: #{tpu_custom_call.1} parent=5 // pred_check_branch
        %94 = sbr.rel (%p91) target = $region12
      $region11: #{tpu_custom_call.1} parent=5 // pred_region
        %s95 = ssub.s32 %s13, 1
      $region12: #{tpu_custom_call.1} parent=5 // pred_fallthru
        _
      %p96 = scmp.lt.s32.totalorder %s13, 2
      // Predicated region
      $region13: #{tpu_custom_call.1} parent=5 // pred_check
        %p97 = pneg %p96
      $region14: #{tpu_custom_call.1} parent=5 // pred_check_branch
        %99 = sbr.rel (%p97) target = $region16
      $region15: #{tpu_custom_call.1} parent=5 // pred_region
        // Predicated region
        $region17: #{tpu_custom_call.1} parent=15 // pred_check
          %p100 = pneg %p47
        $region18: #{tpu_custom_call.1} parent=15 // pred_check_branch
          %102 = sbr.rel (%p100) target = $region20
        $region19: #{tpu_custom_call.1} parent=15 // pred_region
          %s103 = sand.u32 %s37, 1
          %s104 = scalar_lea.sflag [#allocation3], %s103
          %s105 = sand.u32 %s37, 1
          %s106 = smul.addr %s105, 6
          %s107 = scalar_lea.vmem [#allocation2], %s106
          %s109 = ssub.s32 96, 96
          %110 = vsyncadd %s104, %s109
          %s111 = smul.addr %s20, 3
          %s112 = sadd.s32 %s21, %s111
          %s113 = smul.addr %s112, 32
          %s114 = scalar_lea.hbm %s0, %s113
          %s115 = sshll.u32 %s107, 4
          %s116 = int_to_ptr.vmem [resolvable:$true] %s115
          %121 = dma.hbm_to_vmem [thread:$0]  %s114, 96, %s116, %s104, 32, 32, 2
        $region20: #{tpu_custom_call.1} parent=15 // pred_fallthru
          _
      $region16: #{tpu_custom_call.1} parent=5 // pred_fallthru
        _
      %p122 = scmp.le.s32.totalorder 1, %s13
      %p123 = scmp.lt.s32.totalorder %s13, 3
      %p124 = pnand %p122, %p123
      %p125 = pneg %p124
      // Predicated region
      $region21: #{tpu_custom_call.1} parent=5 // pred_check
        _
      $region22: #{tpu_custom_call.1} parent=5 // pred_check_branch
        %127 = sbr.rel (%p124) target = $region24
      $region23: #{tpu_custom_call.1} parent=5 // pred_region
        %s128 = ssub.s32 %s13, 1
        %s129 = sand.u32 %s40, 1
        %s130 = scalar_lea.sflag [#allocation3], %s129
        %s131 = sand.u32 %s40, 1
        %s132 = smul.addr %s131, 6
        %s133 = scalar_lea.vmem [#allocation2], %s132
        // Predicated region
        $region25: #{tpu_custom_call.1} parent=23 // pred_check
          %p134 = pneg %p53
        $region26: #{tpu_custom_call.1} parent=23 // pred_check_branch
          %136 = sbr.rel (%p134) target = $region28
        $region27: #{tpu_custom_call.1} parent=23 // pred_region
          %137 = dma.done %s130, 96
        $region28: #{tpu_custom_call.1} parent=23 // pred_fallthru
          _
        %s138 = sand.u32 %s40, 1
        %s139 = scalar_lea.sflag [#allocation3], %s138
        %s140 = sand.u32 %s40, 1
        %s141 = smul.addr %s140, 6
        %s142 = scalar_lea.vmem [#allocation2], %s141
        %p143 = pneg %p53
        %p144 = pneg %p50
        %p145 = pneg %p81
        %p146 = pneg %p78
        %s147 = sand.u32 %s68, 1
        %s148 = scalar_lea.sflag [#allocation4], %s147
        %s149 = sand.u32 %s68, 1
        %s150 = smul.addr %s149, 6
        %s151 = scalar_lea.vmem [#allocation5], %s150
        %v152 = vld [vmem:[%s133] sm:$0x3]
        %v153 = vld [vmem:[%s133 + $0x2] sm:$0x3]
        %v154 = vld [vmem:[%s133 + $0x4] sm:$0x3]
        %v155 = vmul.f32 %v152, 0.412453
        %v156 = vmul.f32 %v153, 0.35758
        %v157 = vadd.f32 %v155, %v156
        %v158 = vmul.f32 %v154, 0.180423
        %v159 = vadd.f32 %v157, %v158
        %v160 = vmul.f32 %v152, 0.212671
        %v161 = vmul.f32 %v153, 0.71516
        %v162 = vadd.f32 %v160, %v161
        %v163 = vmul.f32 %v154, 0.072169
        %v164 = vadd.f32 %v162, %v163
        %v165 = vmul.f32 %v152, 0.019334
        %v166 = vmul.f32 %v153, 0.119193
        %v167 = vadd.f32 %v165, %v166
        %v168 = vmul.f32 %v154, 0.950227
        %v169 = vadd.f32 %v167, %v168
        %170 = vst [vmem:[%s151] sm:$0x3] %v159
        %171 = vst [vmem:[%s151 + $0x2] sm:$0x3] %v164
        %172 = vst [vmem:[%s151 + $0x4] sm:$0x3] %v169
        %s173 = sand.u32 %s68, 1
        %s174 = scalar_lea.sflag [#allocation4], %s173
        %s175 = sand.u32 %s68, 1
        %s176 = smul.addr %s175, 6
        %s177 = scalar_lea.vmem [#allocation5], %s176
        // Predicated region
        $region29: #{tpu_custom_call.1} parent=23 // pred_check
          %p178 = pneg %p78
        $region30: #{tpu_custom_call.1} parent=23 // pred_check_branch
          %180 = sbr.rel (%p178) target = $region32
        $region31: #{tpu_custom_call.1} parent=23 // pred_region
          %s182 = ssub.s32 96, 96
          %183 = vsyncadd %s174, %s182
          %s184 = smul.addr %s22, 3
          %s185 = sadd.s32 %s23, %s184
          %s186 = smul.addr %s185, 32
          %s187 = scalar_lea.hbm %s1, %s186
          %s188 = sshll.u32 %s177, 4
          %s189 = int_to_ptr.vmem [resolvable:$true] %s188
          %194 = dma.vmem_to_hbm [thread:$0]  %s189, 96, %s187, %s174, 32, 32, 2
        $region32: #{tpu_custom_call.1} parent=23 // pred_fallthru
          _
      $region24: #{tpu_custom_call.1} parent=5 // pred_fallthru
        _
      %p195 = scmp.le.s32.totalorder 2, %s13
      // Predicated region
      $region33: #{tpu_custom_call.1} parent=5 // pred_check
        %p196 = pneg %p195
      $region34: #{tpu_custom_call.1} parent=5 // pred_check_branch
        %198 = sbr.rel (%p196) target = $region36
      $region35: #{tpu_custom_call.1} parent=5 // pred_region
        %s199 = ssub.s32 %s13, 2
        // Predicated region
        $region37: #{tpu_custom_call.1} parent=35 // pred_check
          %p200 = pneg %p84
        $region38: #{tpu_custom_call.1} parent=35 // pred_check_branch
          %202 = sbr.rel (%p200) target = $region40
        $region39: #{tpu_custom_call.1} parent=35 // pred_region
          %s203 = sand.u32 %s69, 1
          %s204 = scalar_lea.sflag [#allocation4], %s203
          %s205 = sand.u32 %s69, 1
          %s206 = smul.addr %s205, 6
          %s207 = scalar_lea.vmem [#allocation5], %s206
          %208 = dma.done %s204, 96
        $region40: #{tpu_custom_call.1} parent=35 // pred_fallthru
          _
      $region36: #{tpu_custom_call.1} parent=5 // pred_fallthru
        _
    $region6: #{tpu_custom_call.1} parent=1 // loop_footer
      %s17 = sadd.s32 1, %s13
    $region7: #{tpu_custom_call.1} parent=1 // loop_footer_branch
      %12 = sbr.rel target = $region3
    $region8: #{tpu_custom_call.1} parent=1 // loop_exit
      _
    %209 = vsyncpa [#allocation3], 1
    %s210 = scalar_lea.sflag [#allocation3], 1
    %211 = vsyncpa %s210, 1
    %212 = vsyncpa [#allocation4], 1
    %s213 = scalar_lea.sflag [#allocation4], 1
    %214 = vsyncpa %s213, 1

</llo_original>
